<compile_context>
chip_gen: v5e
topology: v5e:2x2
jax: 0.10.0
libtpu: 0.0.40
codegen_flags: <defaults>
</compile_context>

<pallas_src>
import jax
import jax.numpy as jnp
from jax.experimental import pallas as pl
from jax.experimental.pallas import tpu as pltpu


def _reward_kernel(s_ref, c_ref, p_ref, qn_ref, rn_ref, w_ref, out_ref):
    s = s_ref[...]                      # (TILE_B, S)
    c = c_ref[...]                      # (TILE_B, C)
    p = p_ref[...]                      # (TILE_B, P)
    # Pre-negated quadratic weights -> pure mul/add chain, no subtract/negate.
    state_term = jnp.sum(s * s * qn_ref[...], axis=-1, keepdims=True)   # (TILE_B, 1)
    ctrl_term = jnp.sum(c * c * rn_ref[...], axis=-1, keepdims=True)    # (TILE_B, 1)
    param_term = jnp.sum(p * w_ref[...], axis=-1, keepdims=True)        # (TILE_B, 1)
    out_ref[...] = state_term + ctrl_term + param_term


class RewardFunctionPallas:
    """JAX/Pallas counterpart of rlkit's RewardFunction interface."""

    def __init__(self, state_dim, control_dim, parameter_dim):
        self.state_dim = state_dim
        self.control_dim = control_dim
        self.param_dim = parameter_dim
        self.d_total = state_dim + control_dim + parameter_dim

        # Deterministic synthetic weights (module __init__ has no params; these
        # define the concrete quadratic-reward instantiation).
        self.q = jnp.linspace(0.5, 1.5, state_dim, dtype=jnp.float32)[None, :]
        self.r = jnp.linspace(0.1, 0.3, control_dim, dtype=jnp.float32)[None, :]
        self.w = jnp.linspace(-0.2, 0.2, parameter_dim, dtype=jnp.float32)[None, :]

        # Pre-negated copies so the kernel never emits a negate/subtract.
        self.q_neg = -self.q
        self.r_neg = -self.r

    @staticmethod
    def _choose_tile_b(batch):
        # Sublane-granular tile; large enough to amortize the ~0.35 us per
        # grid-step overhead, small enough to be a rounding error in VMEM
        # (8192 rows * 23 f32 * 2 buffers ~= 1.5 MiB).
        rounded = ((batch + 7) // 8) * 8
        return max(8, min(8192, rounded))

    def __call__(self, states, controls, parameters):
        B = states.shape[0]
        assert states.shape == (B, self.state_dim)
        assert controls.shape == (B, self.control_dim)
        assert parameters.shape == (B, self.param_dim)

        states = states.astype(jnp.float32)
        controls = controls.astype(jnp.float32)
        parameters = parameters.astype(jnp.float32)

        tile_b = self._choose_tile_b(B)
        num_tiles = pl.cdiv(B, tile_b)
        b_padded = num_tiles * tile_b
        if b_padded != B:
            pad = b_padded - B
            # Zero rows contribute reward 0 and are sliced off below.
            states = jnp.pad(states, ((0, pad), (0, 0)))
            controls = jnp.pad(controls, ((0, pad), (0, 0)))
            parameters = jnp.pad(parameters, ((0, pad), (0, 0)))

        d_total = self.d_total
        cost = pl.CostEstimate(
            flops=3 * b_padded * d_total + 2 * b_padded,
            transcendentals=0,
            bytes_accessed=4 * (b_padded * (d_total + 1) + 2 * d_total),
        )

        out = pl.pallas_call(
            _reward_kernel,
            out_shape=jax.ShapeDtypeStruct((b_padded, 1), jnp.float32),
            grid=(num_tiles,),
            in_specs=[
                pl.BlockSpec((tile_b, self.state_dim), lambda i: (i, 0)),    # batch-tiled
                pl.BlockSpec((tile_b, self.control_dim), lambda i: (i, 0)),  # batch-tiled
                pl.BlockSpec((tile_b, self.param_dim), lambda i: (i, 0)),    # batch-tiled
                pl.BlockSpec((1, self.state_dim), lambda i: (0, 0)),         # resident weights
                pl.BlockSpec((1, self.control_dim), lambda i: (0, 0)),       # resident weights
                pl.BlockSpec((1, self.param_dim), lambda i: (0, 0)),         # resident weights
            ],
            out_specs=pl.BlockSpec((tile_b, 1), lambda i: (i, 0)),
            compiler_params=pltpu.CompilerParams(
                dimension_semantics=("parallel",)),
            cost_estimate=cost,
        )(states, controls, parameters, self.q_neg, self.r_neg, self.w)

        return out[:B]   # (B, 1) to match the module's reward shape


def _reference(states, controls, parameters, q, r, w):
    state_cost = jnp.sum(states * states * q, axis=-1, keepdims=True)
    ctrl_cost = jnp.sum(controls * controls * r, axis=-1, keepdims=True)
    param_term = jnp.sum(parameters * w, axis=-1, keepdims=True)
    return -(state_cost + ctrl_cost) + param_term


if __name__ == "__main__":
    state_dim, control_dim, param_dim = 12, 4, 6
    batch = 8

    key = jax.random.PRNGKey(0)
    k1, k2, k3 = jax.random.split(key, 3)
    states = jax.random.normal(k1, (batch, state_dim), dtype=jnp.float32)
    controls = jax.random.normal(k2, (batch, control_dim), dtype=jnp.float32)
    parameters = jax.random.normal(k3, (batch, param_dim), dtype=jnp.float32)

    rf = RewardFunctionPallas(state_dim, control_dim, param_dim)
    out = rf(states, controls, parameters)
    jax.block_until_ready(out)

    ref = _reference(states, controls, parameters, rf.q, rf.r, rf.w)
    assert out.shape == (batch, 1)
    assert jnp.allclose(out, ref, atol=1e-5, rtol=1e-5)

    print("KERNEL_OK")
</pallas_src>

<mosaic_0001>
module attributes {stable_mosaic.version = 11 : i64} {
  func.func @_reward_kernel(%arg0: i32, %arg1: memref<8x12xf32, #tpu.memory_space<vmem>>, %arg2: memref<8x4xf32, #tpu.memory_space<vmem>>, %arg3: memref<8x6xf32, #tpu.memory_space<vmem>>, %arg4: memref<1x12xf32, #tpu.memory_space<vmem>>, %arg5: memref<1x4xf32, #tpu.memory_space<vmem>>, %arg6: memref<1x6xf32, #tpu.memory_space<vmem>>, %arg7: memref<8x1xf32, #tpu.memory_space<vmem>>) attributes {dimension_semantics = [#tpu.dimension_semantics<parallel>], iteration_bounds = array<i64: 1>, scalar_prefetch = 0 : i64, scratch_operands = 0 : i64, tpu.core_type = #tpu.core_type<tc>, window_params = [{transform_indices = @transform_0, window_bounds = array<i64: 8, 12>}, {transform_indices = @transform_1, window_bounds = array<i64: 8, 4>}, {transform_indices = @transform_2, window_bounds = array<i64: 8, 6>}, {pipeline_mode = #tpu.pipeline_mode<synchronous>, transform_indices = @transform_3, window_bounds = array<i64: 1, 12>}, {pipeline_mode = #tpu.pipeline_mode<synchronous>, transform_indices = @transform_4, window_bounds = array<i64: 1, 4>}, {pipeline_mode = #tpu.pipeline_mode<synchronous>, transform_indices = @transform_5, window_bounds = array<i64: 1, 6>}, {transform_indices = @transform_6, window_bounds = array<i64: 8, 1>}]} {
    %c0 = arith.constant 0 : index
    %c0_0 = arith.constant 0 : index
    %0 = vector.load %arg1[%c0, %c0_0] : memref<8x12xf32, #tpu.memory_space<vmem>>, vector<8x12xf32>
    %c0_1 = arith.constant 0 : index
    %c0_2 = arith.constant 0 : index
    %1 = vector.load %arg2[%c0_1, %c0_2] : memref<8x4xf32, #tpu.memory_space<vmem>>, vector<8x4xf32>
    %c0_3 = arith.constant 0 : index
    %c0_4 = arith.constant 0 : index
    %2 = vector.load %arg3[%c0_3, %c0_4] : memref<8x6xf32, #tpu.memory_space<vmem>>, vector<8x6xf32>
    %3 = arith.mulf %0, %0 : vector<8x12xf32>
    %c0_5 = arith.constant 0 : index
    %c0_6 = arith.constant 0 : index
    %4 = vector.load %arg4[%c0_5, %c0_6] : memref<1x12xf32, #tpu.memory_space<vmem>>, vector<1x12xf32>
    %5 = vector.broadcast %4 : vector<1x12xf32> to vector<8x12xf32>
    %6 = arith.mulf %3, %5 : vector<8x12xf32>
    %cst = arith.constant dense<0.000000e+00> : vector<8xf32>
    %7 = vector.multi_reduction <add>, %6, %cst [1] : vector<8x12xf32> to vector<8xf32>
    %8 = vector.shape_cast %7 : vector<8xf32> to vector<8x1xf32>
    %9 = arith.mulf %1, %1 : vector<8x4xf32>
    %c0_7 = arith.constant 0 : index
    %c0_8 = arith.constant 0 : index
    %10 = vector.load %arg5[%c0_7, %c0_8] : memref<1x4xf32, #tpu.memory_space<vmem>>, vector<1x4xf32>
    %11 = vector.broadcast %10 : vector<1x4xf32> to vector<8x4xf32>
    %12 = arith.mulf %9, %11 : vector<8x4xf32>
    %cst_9 = arith.constant dense<0.000000e+00> : vector<8xf32>
    %13 = vector.multi_reduction <add>, %12, %cst_9 [1] : vector<8x4xf32> to vector<8xf32>
    %14 = vector.shape_cast %13 : vector<8xf32> to vector<8x1xf32>
    %c0_10 = arith.constant 0 : index
    %c0_11 = arith.constant 0 : index
    %15 = vector.load %arg6[%c0_10, %c0_11] : memref<1x6xf32, #tpu.memory_space<vmem>>, vector<1x6xf32>
    %16 = vector.broadcast %15 : vector<1x6xf32> to vector<8x6xf32>
    %17 = arith.mulf %2, %16 : vector<8x6xf32>
    %cst_12 = arith.constant dense<0.000000e+00> : vector<8xf32>
    %18 = vector.multi_reduction <add>, %17, %cst_12 [1] : vector<8x6xf32> to vector<8xf32>
    %19 = vector.shape_cast %18 : vector<8xf32> to vector<8x1xf32>
    %20 = arith.addf %8, %14 : vector<8x1xf32>
    %21 = arith.addf %20, %19 : vector<8x1xf32>
    %c0_13 = arith.constant 0 : index
    %c0_14 = arith.constant 0 : index
    %22 = vector.load %arg7[%c0_13, %c0_14] : memref<8x1xf32, #tpu.memory_space<vmem>>, vector<8x1xf32>
    tpu.vector_store %arg7[%c0_13, %c0_14], %21 {strides = array<i32>} : memref<8x1xf32, #tpu.memory_space<vmem>>, vector<8x1xf32>,
    return
  }
  func.func @transform_0(%arg0: i32) -> (i32, i32) {
    %c0_i32 = arith.constant 0 : i32
    %c0_i32_0 = arith.constant 0 : i32
    return %arg0, %c0_i32 : i32, i32
  }
  func.func @transform_1(%arg0: i32) -> (i32, i32) {
    %c0_i32 = arith.constant 0 : i32
    %c0_i32_0 = arith.constant 0 : i32
    return %arg0, %c0_i32 : i32, i32
  }
  func.func @transform_2(%arg0: i32) -> (i32, i32) {
    %c0_i32 = arith.constant 0 : i32
    %c0_i32_0 = arith.constant 0 : i32
    return %arg0, %c0_i32 : i32, i32
  }
  func.func @transform_3(%arg0: i32) -> (i32, i32) {
    %c0_i32 = arith.constant 0 : i32
    %c0_i32_0 = arith.constant 0 : i32
    %c0_i32_1 = arith.constant 0 : i32
    return %c0_i32, %c0_i32_0 : i32, i32
  }
  func.func @transform_4(%arg0: i32) -> (i32, i32) {
    %c0_i32 = arith.constant 0 : i32
    %c0_i32_0 = arith.constant 0 : i32
    %c0_i32_1 = arith.constant 0 : i32
    return %c0_i32, %c0_i32_0 : i32, i32
  }
  func.func @transform_5(%arg0: i32) -> (i32, i32) {
    %c0_i32 = arith.constant 0 : i32
    %c0_i32_0 = arith.constant 0 : i32
    %c0_i32_1 = arith.constant 0 : i32
    return %c0_i32, %c0_i32_0 : i32, i32
  }
  func.func @transform_6(%arg0: i32) -> (i32, i32) {
    %c0_i32 = arith.constant 0 : i32
    %c0_i32_0 = arith.constant 0 : i32
    return %arg0, %c0_i32 : i32, i32
  }
}

</mosaic_0001>

<llo_original>
// kernel: tpu_custom_call.1
$region0: #{tpu_custom_call.1}
  #allocation0 [shape = 'u32[]', space=smem, size = 0x4, offset = 0x4, fixed_abs, tag = 'smem constant byte address 0x4 - core index']
  #allocation1 [shape = 'u32[72,128]{1,0:T(1,128)}', space=vmem, size = 0x9000, scoped, tag = 'internal scratch']
  %s0 = inlined_call_operand.vmem [shape: f32[8,12], index: 0, kind: input, shape index: {}]
  %s1 = inlined_call_operand.vmem [shape: f32[8,4], index: 1, kind: input, shape index: {}]
  %s2 = inlined_call_operand.hbm [shape: f32[8,6], index: 2, kind: input, shape index: {}]
  %s3 = inlined_call_operand.vmem [shape: f32[1,12], index: 3, kind: input, shape index: {}]
  %s4 = inlined_call_operand.vmem [shape: f32[1,4], index: 4, kind: input, shape index: {}]
  %s5 = inlined_call_operand.vmem [shape: f32[1,6], index: 5, kind: input, shape index: {}]
  %s6 = inlined_call_operand.vmem [shape: f32[8,1], index: 6, kind: output, shape index: {}]
  %s7 = sld [smem:[#allocation0]]
  $region38: #{tpu_custom_call.1} parent=0
    _
  %s9 = ssub.s32 1, %s7
  %s10 = scalar_select 0, %s9, %s7
  $region1: #{tpu_custom_call.1} parent=0
    #allocation2 [shape = 'u8[4096]{0}', space=vmem, size = 0x1000, scoped, tag = 'input window, operand 2, single buffered']
    #allocation3 [shape = 's32[1]{0}', space=sflag, size = 0x4, scoped, tag = 'scoped memory for tpu_custom_call.1']
    %11 = vsyncpa [#allocation3], 0
    // Predicated region
    $region2: #{tpu_custom_call.1} parent=1 // pred_check
      _
    $region3: #{tpu_custom_call.1} parent=1 // pred_check_branch
      %13 = sbr.rel (0) target = $region5
    $region4: #{tpu_custom_call.1} parent=1 // pred_region
      _
    $region5: #{tpu_custom_call.1} parent=1 // pred_fallthru
      _
    // Predicated region
    $region6: #{tpu_custom_call.1} parent=1 // pred_check
      _
    $region7: #{tpu_custom_call.1} parent=1 // pred_check_branch
      %15 = sbr.rel (0) target = $region9
    $region8: #{tpu_custom_call.1} parent=1 // pred_region
      _
    $region9: #{tpu_custom_call.1} parent=1 // pred_fallthru
      _
    // Predicated region
    $region10: #{tpu_custom_call.1} parent=1 // pred_check
      _
    $region11: #{tpu_custom_call.1} parent=1 // pred_check_branch
      %17 = sbr.rel (0) target = $region13
    $region12: #{tpu_custom_call.1} parent=1 // pred_region
      %19 = vsyncadd [#allocation3], 0
      %s21 = sshll.u32 %s2, 4
      %s22 = int_to_ptr.hbm [resolvable:$true] %s21
      %s23 = sshll.u32 [#allocation2], 4
      %s24 = int_to_ptr.vmem [resolvable:$true] %s23
      %26 = dma.hbm_to_vmem [thread:$0]  %s22, 128, %s24, [#allocation3]
    $region13: #{tpu_custom_call.1} parent=1 // pred_fallthru
      _
    // Predicated region
    $region14: #{tpu_custom_call.1} parent=1 // pred_check
      _
    $region15: #{tpu_custom_call.1} parent=1 // pred_check_branch
      %28 = sbr.rel (0) target = $region17
    $region16: #{tpu_custom_call.1} parent=1 // pred_region
      _
    $region17: #{tpu_custom_call.1} parent=1 // pred_fallthru
      _
    // Predicated region
    $region18: #{tpu_custom_call.1} parent=1 // pred_check
      _
    $region19: #{tpu_custom_call.1} parent=1 // pred_check_branch
      %30 = sbr.rel (0) target = $region21
    $region20: #{tpu_custom_call.1} parent=1 // pred_region
      _
    $region21: #{tpu_custom_call.1} parent=1 // pred_fallthru
      _
    // Predicated region
    $region22: #{tpu_custom_call.1} parent=1 // pred_check
      _
    $region23: #{tpu_custom_call.1} parent=1 // pred_check_branch
      %32 = sbr.rel (0) target = $region25
    $region24: #{tpu_custom_call.1} parent=1 // pred_region
      _
    $region25: #{tpu_custom_call.1} parent=1 // pred_fallthru
      _
    // Predicated region
    $region26: #{tpu_custom_call.1} parent=1 // pred_check
      _
    $region27: #{tpu_custom_call.1} parent=1 // pred_check_branch
      %34 = sbr.rel (0) target = $region29
    $region28: #{tpu_custom_call.1} parent=1 // pred_region
      %36 = dma.done [#allocation3], 128
    $region29: #{tpu_custom_call.1} parent=1 // pred_fallthru
      _
    %v37 = vld [vmem:[%s0] sm:$0xff]
    %v38 = vld [vmem:[%s1] sm:$0xff]
    %v39 = vld [vmem:[#allocation2] sm:$0xff]
    %v40 = vmul.f32 %v37, %v37
    %v41 = vld [vmem:[%s3] sm:$0x1]
    %v43 = vperm.slane %v41, 0
    %v45 = vmul.f32 %v40, %v43
    %vm46 = vcmask 97280
    %v47 = vsel %vm46, %v45, 0.0
    %48 = vadd.xlane.f32.xlu0 %v47
    %v49 = vpop.xlane.xlu0 %48
    %v50 = vmul.f32 %v38, %v38
    %v51 = vld [vmem:[%s4] sm:$0x1]
    %v53 = vperm.slane %v51, 0
    %v55 = vmul.f32 %v50, %v53
    %vm56 = vcmask 31744
    %v57 = vsel %vm56, %v55, 0.0
    %58 = vadd.xlane.f32.xlu0 %v57
    %v59 = vpop.xlane.xlu0 %58
    %v60 = vld [vmem:[%s5] sm:$0x1]
    %v62 = vperm.slane %v60, 0
    %v64 = vmul.f32 %v39, %v62
    %vm65 = vcmask 48128
    %v66 = vsel %vm65, %v64, 0.0
    %67 = vadd.xlane.f32.xlu0 %v66
    %v68 = vpop.xlane.xlu0 %67
    %v69 = vadd.f32 %v49, %v59
    %v70 = vadd.f32 %v69, %v68
    %vm71 = vcmask 7168
    %72 = vst.msk [vmem:[%s6] sm:$0xff] %vm71, %v70
    // Predicated region
    $region30: #{tpu_custom_call.1} parent=1 // pred_check
      _
    $region31: #{tpu_custom_call.1} parent=1 // pred_check_branch
      %74 = sbr.rel (0) target = $region33
    $region32: #{tpu_custom_call.1} parent=1 // pred_region
      _
    $region33: #{tpu_custom_call.1} parent=1 // pred_fallthru
      _
    // Predicated region
    $region34: #{tpu_custom_call.1} parent=1 // pred_check
      _
    $region35: #{tpu_custom_call.1} parent=1 // pred_check_branch
      %76 = sbr.rel (0) target = $region37
    $region36: #{tpu_custom_call.1} parent=1 // pred_region
      _
    $region37: #{tpu_custom_call.1} parent=1 // pred_fallthru
      _
    %77 = vsyncpa [#allocation3], 1

</llo_original>
